<compile_context>
chip_gen: v7x
topology: tpu7x:2x2x1
jax: 0.10.0
libtpu: 0.0.40
codegen_flags: <defaults>
</compile_context>

<pallas_src>
import functools

import jax
import jax.numpy as jnp
from jax.experimental import pallas as pl
from jax.experimental.pallas import tpu as pltpu


_LANE = 128
_TARGET_STEP_INPUT_BYTES = 4 * 1024 * 1024   # ~4 MiB of input per grid step
_MIN_GRID_STEPS = 4                          # keep both v7x TensorCores busy


def _round_up(x, m):
    return ((x + m - 1) // m) * m


def _sublane(itemsize):
    # sublane multiple: 8 for f32, 16 for bf16/f16, 32 for int8/fp8
    return max(8, 32 // max(1, itemsize))


@functools.lru_cache(maxsize=1)
def _vmem_limit_bytes():
    phys = 64 * 1024 * 1024                  # conservative: v7x per-core VMEM
    try:
        info = pltpu.get_tpu_info()
        for name in ("vmem_capacity_bytes", "vmem_bytes", "vmem_size_bytes"):
            v = getattr(info, name, None)
            if isinstance(v, int) and v > 0:
                phys = v
                break
    except Exception:
        pass
    # 48 MiB on v7x (64 MiB physical), 96 MiB on v5e/v6e (128 MiB physical).
    return max(32 * 1024 * 1024, min(int(phys * 3 // 4), 112 * 1024 * 1024))


def _pick_t_oh(N, OH, OW, C, itemsize, vmem_limit, nchw_out):
    """Pick how many output rows (of OW pixels) one grid step produces."""
    sub = _sublane(itemsize)

    def in_blk(t):                            # (1, t, 2, OW, 2C), (8,128)-padded
        return t * 2 * _round_up(OW, sub) * _round_up(2 * C, _LANE) * itemsize

    def out_blk(t):
        rows = t * OW
        if nchw_out:                          # (1, C, rows)
            return _round_up(C, sub) * _round_up(rows, _LANE) * itemsize
        return _round_up(rows, sub) * _round_up(C, _LANE) * itemsize  # (1, rows, C)

    def f32_tmp(t):                           # y (rows, C) f32 (+ y^T for NCHW out)
        rows = t * OW
        n = _round_up(rows, 8) * _round_up(C, _LANE)
        if nchw_out:
            n += _round_up(C, 8) * _round_up(rows, _LANE)
        return n * 4

    w_blk = _round_up(4 * C, sub) * _round_up(C, _LANE) * itemsize

    def vmem_need(t):
        # 2x pipeline buffers for input/output blocks, ~2x input block for
        # loaded-operand temporaries (incl. a possible relayout copy when
        # OW % sublane != 0), f32 matmul results, resident weight (x2).
        return 4 * in_blk(t) + 2 * out_blk(t) + f32_tmp(t) + 2 * w_blk

    budget = int(vmem_limit * 3 // 4)

    def shape_ok(t):
        # output block stays legal & lane-dense: row count multiple of 128
        # lanes, or the block covers the full OH*OW extent.
        return (t * OW) % _LANE == 0 or t == OH

    divisors = [d for d in range(1, OH + 1) if OH % d == 0]
    legal = [d for d in divisors if shape_ok(d) and vmem_need(d) <= budget]
    if not legal:
        # Degrade gracefully: smallest-footprint legally-shaped block.
        shaped = [d for d in divisors if shape_ok(d)]
        return min(shaped, key=vmem_need)

    # Keep >= _MIN_GRID_STEPS grid steps so both v7x TensorCores get work.
    min_steps = -(-_MIN_GRID_STEPS // max(N, 1))     # ceil(4 / N)
    cap = max(1, OH // min_steps)
    capped = [d for d in legal if d <= cap] or legal

    under = [d for d in capped if in_blk(d) <= _TARGET_STEP_INPUT_BYTES]
    return max(under) if under else min(capped)


def _downsample_kernel(x_ref, w_ref, o_ref, *, t_oh, OW, C, nchw_out):
    # x_ref: (1, t_oh, 2, OW, 2C)  -- kh in its own dim, (kw, ci) packed on lanes
    # w_ref: (4C, C)               -- rows ordered (kh, kw, ci)
    # o_ref: (1, C, t_oh*OW) for NCHW out, else (1, t_oh*OW, C)
    rows = t_oh * OW
    top = x_ref[0, :, 0].reshape(rows, 2 * C)    # kh = 0 (even input rows)
    bot = x_ref[0, :, 1].reshape(rows, 2 * C)    # kh = 1 (odd input rows)
    w = w_ref[...]
    y = jnp.dot(top, w[: 2 * C, :], preferred_element_type=jnp.float32)
    y = y + jnp.dot(bot, w[2 * C:, :], preferred_element_type=jnp.float32)
    if nchw_out:
        # Cast first (less data through the XLU), then transpose on-chip so the
        # store is channel-major (NCHW) and lane-dense.
        o_ref[0, :, :] = jnp.transpose(y.astype(o_ref.dtype))
    else:
        o_ref[0, :, :] = y.astype(o_ref.dtype)


def _build_call(N, OH, OW, C, dtype, nchw_out):
    itemsize = jnp.dtype(dtype).itemsize
    vmem_limit = _vmem_limit_bytes()
    t_oh = _pick_t_oh(N, OH, OW, C, itemsize, vmem_limit, nchw_out)
    rows = t_oh * OW
    K = 4 * C

    kernel = functools.partial(
        _downsample_kernel, t_oh=t_oh, OW=OW, C=C, nchw_out=nchw_out)

    if nchw_out:
        out_shape = jax.ShapeDtypeStruct((N, C, OH * OW), dtype)
        out_spec = pl.BlockSpec((1, C, rows), lambda n, i: (n, 0, i))
    else:
        out_shape = jax.ShapeDtypeStruct((N, OH * OW, C), dtype)
        out_spec = pl.BlockSpec((1, rows, C), lambda n, i: (n, i, 0))

    flops = 2 * N * OH * OW * K * C
    bytes_accessed = (N * OH * 2 * OW * 2 * C + K * C + N * C * OH * OW) * itemsize

    return pl.pallas_call(
        kernel,
        out_shape=out_shape,
        grid=(N, OH // t_oh),
        in_specs=[
            # One contiguous DMA per grid step covering 2*t_oh input rows.
            pl.BlockSpec((1, t_oh, 2, OW, 2 * C), lambda n, i: (n, i, 0, 0, 0)),
            # Weight: same block every step -> stays resident in VMEM.
            pl.BlockSpec((K, C), lambda n, i: (0, 0)),
        ],
        out_specs=out_spec,
        compiler_params=pltpu.CompilerParams(
            dimension_semantics=("parallel", "parallel"),
            vmem_limit_bytes=vmem_limit,
        ),
        cost_estimate=pl.CostEstimate(
            flops=flops, transcendentals=0, bytes_accessed=bytes_accessed),
    )


@jax.jit
def downsample(x, w):
    """NCHW Conv2d(C, C, k=2, s=2, bias=False).  x: (N,C,H,W), w: (C,C,2,2) OIHW."""
    N, C, H, W = x.shape
    assert H % 2 == 0 and W % 2 == 0
    OH, OW = H // 2, W // 2
    # The only real layout pass (one HBM read+write); everything after it is a
    # free dim split/merge.  Prefer downsample_nhwc() when the model is NHWC.
    x_nhwc = jnp.transpose(x, (0, 2, 3, 1))
    x_r = x_nhwc.reshape(N, OH, 2, OW, 2 * C)
    # OIHW -> (kh, kw, ci, co) -> (4C, C); matches the (kw, ci) lane packing.
    w_mat = jnp.transpose(w, (2, 3, 1, 0)).reshape(4 * C, C).astype(x.dtype)
    out = _build_call(N, OH, OW, C, x.dtype, nchw_out=True)(x_r, w_mat)
    # Free reshape: (N, C, OH*OW) -> (N, C, OH, OW); no output transpose needed.
    return out.reshape(N, C, OH, OW)


@jax.jit
def downsample_nhwc(x, w):
    """Transpose-free fast path: NHWC in / NHWC out.  x: (N,H,W,C), w: (C,C,2,2)."""
    N, H, W, C = x.shape
    assert H % 2 == 0 and W % 2 == 0
    OH, OW = H // 2, W // 2
    x_r = x.reshape(N, OH, 2, OW, 2 * C)                  # free view
    w_mat = jnp.transpose(w, (2, 3, 1, 0)).reshape(4 * C, C).astype(x.dtype)
    out = _build_call(N, OH, OW, C, x.dtype, nchw_out=False)(x_r, w_mat)
    return out.reshape(N, OH, OW, C)


def _check(N, C, H, W, key):
    kx, kw = jax.random.split(key)
    x = jax.random.normal(kx, (N, C, H, W), dtype=jnp.float32)
    w = jax.random.normal(kw, (C, C, 2, 2), dtype=jnp.float32) * 0.1
    ref = jax.lax.conv_general_dilated(
        x, w, window_strides=(2, 2), padding="VALID",
        dimension_numbers=("NCHW", "OIHW", "NCHW"))

    y = jax.block_until_ready(downsample(x, w))
    assert y.shape == (N, C, H // 2, W // 2)
    assert jnp.allclose(y, ref, atol=1e-4, rtol=1e-4), float(jnp.max(jnp.abs(y - ref)))

    # Transpose-free NHWC fast path must agree with the reference too.
    y2 = jax.block_until_ready(downsample_nhwc(jnp.transpose(x, (0, 2, 3, 1)), w))
    y2_nchw = jnp.transpose(y2, (0, 3, 1, 2))
    assert jnp.allclose(y2_nchw, ref, atol=1e-4, rtol=1e-4), \
        float(jnp.max(jnp.abs(y2_nchw - ref)))


if __name__ == "__main__":
    key = jax.random.PRNGKey(0)
    k1, k2 = jax.random.split(key)
    # Small shape matching the module spec.
    _check(2, 4, 16, 16, k1)
    # Slightly larger shape that exercises multi-step tiling (grid = (2, 2)).
    _check(2, 8, 64, 256, k2)
    print("KERNEL_OK")
</pallas_src>

<mosaic_0001>
module attributes {stable_mosaic.version = 11 : i64} {
  func.func @_downsample_kernel(%arg0: i32, %arg1: i32, %arg2: memref<1x8x2x8x8xf32, #tpu.memory_space<vmem>>, %arg3: memref<16x4xf32, #tpu.memory_space<vmem>>, %arg4: memref<1x4x64xf32, #tpu.memory_space<vmem>>) attributes {dimension_semantics = [#tpu.dimension_semantics<parallel>, #tpu.dimension_semantics<parallel>], iteration_bounds = array<i64: 2, 1>, scalar_prefetch = 0 : i64, scratch_operands = 0 : i64, tpu.core_type = #tpu.core_type<tc>, window_params = [{transform_indices = @transform_0, window_bounds = array<i64: 1, 8, 2, 8, 8>}, {pipeline_mode = #tpu.pipeline_mode<synchronous>, transform_indices = @transform_1, window_bounds = array<i64: 16, 4>}, {transform_indices = @transform_2, window_bounds = array<i64: 1, 4, 64>}]} {
    %c0 = arith.constant 0 : index
    %c0_0 = arith.constant 0 : index
    %c0_1 = arith.constant 0 : index
    %c0_2 = arith.constant 0 : index
    %c0_3 = arith.constant 0 : index
    %0 = vector.load %arg2[%c0, %c0_0, %c0_1, %c0_2, %c0_3] : memref<1x8x2x8x8xf32, #tpu.memory_space<vmem>>, vector<1x8x1x8x8xf32>
    %1 = vector.shape_cast %0 : vector<1x8x1x8x8xf32> to vector<8x8x8xf32>
    %2 = vector.shape_cast %1 : vector<8x8x8xf32> to vector<64x8xf32>
    %c0_4 = arith.constant 0 : index
    %c0_5 = arith.constant 0 : index
    %c1 = arith.constant 1 : index
    %c0_6 = arith.constant 0 : index
    %c0_7 = arith.constant 0 : index
    %3 = vector.load %arg2[%c0_4, %c0_5, %c1, %c0_6, %c0_7] : memref<1x8x2x8x8xf32, #tpu.memory_space<vmem>>, vector<1x8x1x8x8xf32>
    %4 = vector.shape_cast %3 : vector<1x8x1x8x8xf32> to vector<8x8x8xf32>
    %5 = vector.shape_cast %4 : vector<8x8x8xf32> to vector<64x8xf32>
    %c0_8 = arith.constant 0 : index
    %c0_9 = arith.constant 0 : index
    %6 = vector.load %arg3[%c0_8, %c0_9] : memref<16x4xf32, #tpu.memory_space<vmem>>, vector<16x4xf32>
    %7 = vector.extract_strided_slice %6 {offsets = [0, 0], sizes = [8, 4], strides = [1, 1]} : vector<16x4xf32> to vector<8x4xf32>
    %cst = arith.constant dense<0.000000e+00> : vector<64x4xf32>
    %8 = tpu.matmul %2, %7, %cst {dimension_numbers = #tpu.dot_dimension_numbers<[1], [0], [0], [1], [0, 0, 1, 1], [], []>} : vector<64x8xf32>, vector<8x4xf32>, vector<64x4xf32> -> vector<64x4xf32>
    %9 = vector.extract_strided_slice %6 {offsets = [8, 0], sizes = [8, 4], strides = [1, 1]} : vector<16x4xf32> to vector<8x4xf32>
    %cst_10 = arith.constant dense<0.000000e+00> : vector<64x4xf32>
    %10 = tpu.matmul %5, %9, %cst_10 {dimension_numbers = #tpu.dot_dimension_numbers<[1], [0], [0], [1], [0, 0, 1, 1], [], []>} : vector<64x8xf32>, vector<8x4xf32>, vector<64x4xf32> -> vector<64x4xf32>
    %11 = arith.addf %8, %10 : vector<64x4xf32>
    %12 = tpu.transpose %11, [1, 0] : vector<64x4xf32> -> vector<4x64xf32>
    %c0_11 = arith.constant 0 : index
    %c0_12 = arith.constant 0 : index
    %c0_13 = arith.constant 0 : index
    %13 = vector.load %arg4[%c0_11, %c0_12, %c0_13] : memref<1x4x64xf32, #tpu.memory_space<vmem>>, vector<1x4x64xf32>
    %14 = vector.shape_cast %13 : vector<1x4x64xf32> to vector<4x64xf32>
    %15 = vector.shape_cast %12 : vector<4x64xf32> to vector<1x4x64xf32>
    tpu.vector_store %arg4[%c0_11, %c0_12, %c0_13], %15 {strides = array<i32>} : memref<1x4x64xf32, #tpu.memory_space<vmem>>, vector<1x4x64xf32>,
    return
  }
  func.func @transform_0(%arg0: i32, %arg1: i32) -> (i32, i32, i32, i32, i32) {
    %c0_i32 = arith.constant 0 : i32
    %c0_i32_0 = arith.constant 0 : i32
    %c0_i32_1 = arith.constant 0 : i32
    %c0_i32_2 = arith.constant 0 : i32
    return %arg0, %arg1, %c0_i32, %c0_i32_0, %c0_i32_1 : i32, i32, i32, i32, i32
  }
  func.func @transform_1(%arg0: i32, %arg1: i32) -> (i32, i32) {
    %c0_i32 = arith.constant 0 : i32
    %c0_i32_0 = arith.constant 0 : i32
    %c0_i32_1 = arith.constant 0 : i32
    return %c0_i32, %c0_i32_0 : i32, i32
  }
  func.func @transform_2(%arg0: i32, %arg1: i32) -> (i32, i32, i32) {
    %c0_i32 = arith.constant 0 : i32
    %c0_i32_0 = arith.constant 0 : i32
    return %arg0, %c0_i32, %arg1 : i32, i32, i32
  }
}

</mosaic_0001>

<llo_original>
// kernel: downsample.1
$region0: #{downsample.1}
  #allocation0 [shape = 'u32[]', space=smem, size = 0x4, offset = 0x4, fixed_abs, tag = 'smem constant byte address 0x4 - core index']
  #allocation1 [shape = 'u32[144,128]{1,0:T(1,128)}', space=vmem, size = 0x12000, scoped, tag = 'internal scratch']
  %s0 = inlined_call_operand.vmem [shape: f32[2,8,2,8,8], index: 0, kind: input, shape index: {}]
  %s1 = inlined_call_operand.vmem [shape: f32[16,4], index: 1, kind: input, shape index: {}]
  %s2 = inlined_call_operand.vmem [shape: f32[2,4,64], index: 2, kind: output, shape index: {}]
  %s3 = sld [smem:[#allocation0]]
  $region41: #{downsample.1} parent=0
    _
  %s5 = ssub.s32 1, %s3
  %s6 = scalar_select 0, %s5, %s3
  loop: start=0, step=1, limit=4
  $region2: #{downsample.1} parent=0 // loop_pre_header
    _
  $region3: #{downsample.1} parent=0 // loop_header
    %s8 = sphi 0, %s12
    %p9 = scmp.ge.s32.totalorder %s8, 4
    %s15 = sphi 0, %s27
    %s16 = sphi 0, %s23
    %s17 = sphi 0, %s15
    %s18 = sphi 0, %s16
    %s19 = sphi 0, %s17
    %s20 = sphi 0, %s18
    %s32 = sphi 0, %s34
    %s35 = sphi 0, %s32
    %s36 = sphi 0, %s35
    %s52 = sphi 0, %s36
    %s56 = sphi 0, %s56
    %s58 = sphi 0, %s56
    %s59 = sphi 0, %s58
    %s73 = sphi 0, %s59
    %s81 = sphi 0, %s83
    %s84 = sphi 0, %s81
    %s85 = sphi 0, %s84
    %s101 = sphi 0, %s85
  $region4: #{downsample.1} parent=0 // loop_header_branch
    %11 = sbr.rel (%p9) target = $region8
  $region5: #{downsample.1} parent=0 // loop_body
    %s13 = ssub.s32 %s8, 1
    %s14 = ssub.s32 %s8, 2
    %s21 = sadd.s32 1, %s16
    %p22 = scmp.ge.s32.totalorder %s21, 1
    %s23 = scalar_select %p22, 0, %s21
    %s24 = sadd.s32 1, %s15
    %s25 = scalar_select %p22, %s24, %s15
    %p26 = scmp.ge.s32.totalorder %s25, 2
    %s27 = scalar_select %p26, 0, %s25
    %s28 = ssub.s32 %s15, %s27
    %s29 = ssub.s32 %s16, %s23
    %s30 = sor.u32 %s28, %s29
    %p31 = scmp.eq.s32.totalorder %s30, 0
    %s33 = sadd.s32 %s32, 1
    %s34 = scalar_select %p31, %s32, %s33
    %p37 = pneg %p31
    %p38 = scmp.eq.s32.totalorder %s8, 1
    %p39 = por %p37, %p38
    %p40 = scmp.ne.s32.totalorder %s32, %s35
    %p41 = scmp.eq.s32.totalorder %s8, 0
    %p42 = por %p40, %p41
    %p43 = scmp.ne.s32.totalorder %s32, %s35
    %p44 = scmp.eq.s32.totalorder %s13, 1
    %p45 = por %p43, %p44
    %p46 = scmp.ne.s32.totalorder %s35, %s36
    %p47 = scmp.eq.s32.totalorder %s13, 0
    %p48 = por %p46, %p47
    %p49 = scmp.ne.s32.totalorder %s35, %s36
    %p50 = scmp.eq.s32.totalorder %s14, 1
    %p51 = por %p49, %p50
    %p53 = scmp.ne.s32.totalorder %s36, %s52
    %p54 = scmp.eq.s32.totalorder %s14, 0
    %p55 = por %p53, %p54
    %s57 = sadd.s32 %s56, 1
    %p60 = scmp.eq.s32.totalorder %s8, 1
    %p61 = scmp.ne.s32.totalorder %s56, %s58
    %p62 = scmp.eq.s32.totalorder %s8, 0
    %p63 = por %p61, %p62
    %p64 = scmp.ne.s32.totalorder %s56, %s58
    %p65 = scmp.eq.s32.totalorder %s13, 1
    %p66 = por %p64, %p65
    %p67 = scmp.ne.s32.totalorder %s58, %s59
    %p68 = scmp.eq.s32.totalorder %s13, 0
    %p69 = por %p67, %p68
    %p70 = scmp.ne.s32.totalorder %s58, %s59
    %p71 = scmp.eq.s32.totalorder %s14, 1
    %p72 = por %p70, %p71
    %p74 = scmp.ne.s32.totalorder %s59, %s73
    %p75 = scmp.eq.s32.totalorder %s14, 0
    %p76 = por %p74, %p75
    %s77 = ssub.s32 %s15, %s27
    %s78 = ssub.s32 %s16, %s23
    %s79 = sor.u32 %s77, %s78
    %p80 = scmp.eq.s32.totalorder %s79, 0
    %s82 = sadd.s32 %s81, 1
    %s83 = scalar_select %p80, %s81, %s82
    %p86 = pneg %p80
    %p87 = scmp.eq.s32.totalorder %s8, 1
    %p88 = por %p86, %p87
    %p89 = scmp.ne.s32.totalorder %s81, %s84
    %p90 = scmp.eq.s32.totalorder %s8, 0
    %p91 = por %p89, %p90
    %p92 = scmp.ne.s32.totalorder %s81, %s84
    %p93 = scmp.eq.s32.totalorder %s13, 1
    %p94 = por %p92, %p93
    %p95 = scmp.ne.s32.totalorder %s84, %s85
    %p96 = scmp.eq.s32.totalorder %s13, 0
    %p97 = por %p95, %p96
    %p98 = scmp.ne.s32.totalorder %s84, %s85
    %p99 = scmp.eq.s32.totalorder %s14, 1
    %p100 = por %p98, %p99
    %p102 = scmp.ne.s32.totalorder %s85, %s101
    %p103 = scmp.eq.s32.totalorder %s14, 0
    %p104 = por %p102, %p103
    %p105 = scmp.le.s32.totalorder 1, %s8
    %p106 = scmp.lt.s32.totalorder %s8, 3
    %p107 = pnand %p105, %p106
    %p108 = pneg %p107
    // Predicated region
    $region9: #{downsample.1} parent=5 // pred_check
      _
    $region10: #{downsample.1} parent=5 // pred_check_branch
      %110 = sbr.rel (%p107) target = $region12
    $region11: #{downsample.1} parent=5 // pred_region
      %s111 = ssub.s32 %s8, 1
      // Predicated region
      $region13: #{downsample.1} parent=11 // pred_check
        %p112 = pneg %p69
      $region14: #{downsample.1} parent=11 // pred_check_branch
        %114 = sbr.rel (%p112) target = $region16
      $region15: #{downsample.1} parent=11 // pred_region
        _
      $region16: #{downsample.1} parent=11 // pred_fallthru
        _
    $region12: #{downsample.1} parent=5 // pred_fallthru
      _
    %p115 = scmp.lt.s32.totalorder %s8, 2
    // Predicated region
    $region17: #{downsample.1} parent=5 // pred_check
      %p116 = pneg %p115
    $region18: #{downsample.1} parent=5 // pred_check_branch
      %118 = sbr.rel (%p116) target = $region20
    $region19: #{downsample.1} parent=5 // pred_region
      // Predicated region
      $region21: #{downsample.1} parent=19 // pred_check
        %p119 = pneg %p42
      $region22: #{downsample.1} parent=19 // pred_check_branch
        %121 = sbr.rel (%p119) target = $region24
      $region23: #{downsample.1} parent=19 // pred_region
        %s122 = smul.u32 8, %s16
        %p123 = scmp.lt.s32.totalorder %s15, 1
        %s124 = scalar_select %p123, %s15, 1
        %p125 = scmp.lt.s32.totalorder %s122, 7
        %s126 = scalar_select %p125, %s122, 7
        %s127 = smul.addr %s126, 2
        %s128 = smul.addr %s124, 16
        %s129 = sadd.s32 %s127, %s128
        %s130 = smul.addr %s129, 8
        %s131 = scalar_lea.vmem %s0, %s130
        %s132 = smul.u32 8, %s16
      $region24: #{downsample.1} parent=19 // pred_fallthru
        _
    $region20: #{downsample.1} parent=5 // pred_fallthru
      _
    %p133 = scmp.le.s32.totalorder 1, %s8
    %p134 = scmp.lt.s32.totalorder %s8, 3
    %p135 = pnand %p133, %p134
    %p136 = pneg %p135
    // Predicated region
    $region25: #{downsample.1} parent=5 // pred_check
      _
    $region26: #{downsample.1} parent=5 // pred_check_branch
      %138 = sbr.rel (%p135) target = $region28
    $region27: #{downsample.1} parent=5 // pred_region
      %s139 = ssub.s32 %s8, 1
      %s140 = smul.u32 8, %s18
      %p141 = scmp.lt.s32.totalorder %s17, 1
      %s142 = scalar_select %p141, %s17, 1
      %p143 = scmp.lt.s32.totalorder %s140, 7
      %s144 = scalar_select %p143, %s140, 7
      %s145 = smul.addr %s144, 2
      %s146 = smul.addr %s142, 16
      %s147 = sadd.s32 %s145, %s146
      %s148 = smul.addr %s147, 8
      %s149 = scalar_lea.vmem %s0, %s148
      %p150 = pneg %p48
      %p151 = pneg %p45
      %p152 = pneg %p69
      %p153 = pneg %p66
      %p154 = pneg %p97
      %p155 = pneg %p94
      %p156 = scmp.lt.s32.totalorder %s17, 1
      %s157 = scalar_select %p156, %s17, 1
      %p158 = scmp.lt.s32.totalorder %s18, 0
      %s159 = scalar_select %p158, %s18, 0
      %s160 = sadd.s32 %s159, %s157
      %s161 = smul.addr %s160, 4
      %s162 = scalar_lea.vmem %s2, %s161
      %s163 = smul.u32 8, %s18
      %p164 = scmp.lt.s32.totalorder %s17, 1
      %s165 = scalar_select %p164, %s17, 1
      %p166 = scmp.lt.s32.totalorder %s163, 7
      %s167 = scalar_select %p166, %s163, 7
      %s168 = smul.addr %s167, 2
      %s169 = smul.addr %s165, 16
      %s170 = sadd.s32 %s168, %s169
      %s171 = smul.addr %s170, 8
      %s172 = scalar_lea.vmem %s0, %s171
      %s173 = smul.u32 8, %s18
      %p174 = scmp.lt.s32.totalorder %s17, 1
      %s175 = scalar_select %p174, %s17, 1
      %p176 = scmp.lt.s32.totalorder %s18, 0
      %s177 = scalar_select %p176, %s18, 0
      %s178 = sadd.s32 %s177, %s175
      %s179 = smul.addr %s178, 4
      %s180 = scalar_lea.vmem %s2, %s179
      %v181 = vld [vmem:[%s172] sm:$0xff]
      %v182 = vld [vmem:[%s172 + $0x10] sm:$0xff]
      %v183 = vld [vmem:[%s172 + $0x20] sm:$0xff]
      %v184 = vld [vmem:[%s172 + $0x30] sm:$0xff]
      %v185 = vld [vmem:[%s172 + $0x40] sm:$0xff]
      %v186 = vld [vmem:[%s172 + $0x50] sm:$0xff]
      %v187 = vld [vmem:[%s172 + $0x60] sm:$0xff]
      %v188 = vld [vmem:[%s172 + $0x70] sm:$0xff]
      %s189 = scalar_lea.vmem %s172, 8
      %v190 = vld [vmem:[%s189] sm:$0xff]
      %v191 = vld [vmem:[%s189 + $0x10] sm:$0xff]
      %v192 = vld [vmem:[%s189 + $0x20] sm:$0xff]
      %v193 = vld [vmem:[%s189 + $0x30] sm:$0xff]
      %v194 = vld [vmem:[%s189 + $0x40] sm:$0xff]
      %v195 = vld [vmem:[%s189 + $0x50] sm:$0xff]
      %v196 = vld [vmem:[%s189 + $0x60] sm:$0xff]
      %v197 = vld [vmem:[%s189 + $0x70] sm:$0xff]
      %v198 = vld [vmem:[%s1] sm:$0xff]
      %v199 = vld [vmem:[%s1 + $0x8] sm:$0xff]
      %vm200 = vcmask 64512
      %v202 = vsel %vm200, %v190, 0
      %v205 = vsel %vm200, %v191, 0
      %v208 = vsel %vm200, %v192, 0
      %v211 = vsel %vm200, %v193, 0
      %v214 = vsel %vm200, %v194, 0
      %v217 = vsel %vm200, %v195, 0
      %v220 = vsel %vm200, %v196, 0
      %v223 = vsel %vm200, %v197, 0
      %225 = vmatprep.subr.mxu0 0.0
      %226 = vmatpush1.msra.mxu0 %v199
      %227 = vmatprep.subr.mxu0 0.0
      %228 = vmatpush1.msra.mxu0 0.0
      %229 = vmatprep.subr.mxu0 0.0
      %230 = vmatpush1.msra.mxu0 0.0
      %231 = vmatprep.subr.mxu0 0.0
      %232 = vmatpush1.msra.mxu0 0.0
      %233 = vmatprep.subr.mxu0 0.0
      %234 = vmatpush1.msra.mxu0 0.0
      %235 = vmatprep.subr.mxu0 0.0
      %236 = vmatpush1.msra.mxu0 0.0
      %237 = vmatprep.subr.mxu0 0.0
      %238 = vmatpush1.msra.mxu0 0.0
      %239 = vmatprep.subr.mxu0 0.0
      %240 = vmatpush1.msra.mxu0 0.0
      %241 = vmatprep.subr.mxu0 0.0
      %242 = vmatpush1.msra.mxu0 0.0
      %243 = vmatprep.subr.mxu0 0.0
      %244 = vmatpush1.msra.mxu0 0.0
      %245 = vmatprep.subr.mxu0 0.0
      %246 = vmatpush1.msra.mxu0 0.0
      %247 = vmatprep.subr.mxu0 0.0
      %248 = vmatpush1.msra.mxu0 0.0
      %249 = vmatprep.subr.mxu0 0.0
      %250 = vmatpush1.msra.mxu0 0.0
      %251 = vmatprep.subr.mxu0 0.0
      %252 = vmatpush1.msra.mxu0 0.0
      %253 = vmatprep.subr.mxu0 0.0
      %254 = vmatpush1.msra.mxu0 0.0
      %255 = vmatprep.subr.mxu0 0.0
      %256 = vmatpush1.msra.mxu0 0.0
      %257 = vmatprep.subr.mxu0 0.0
      %258 = vmatpush1.msra.mxu0 0.0
      %259 = vmatprep.subr.mxu0 0.0
      %260 = vmatpush1.msra.mxu0 0.0
      %261 = vmatprep.subr.mxu0 0.0
      %262 = vmatpush1.msra.mxu0 0.0
      %263 = vmatprep.subr.mxu0 0.0
      %264 = vmatpush1.msra.mxu0 0.0
      %265 = vmatprep.subr.mxu0 0.0
      %266 = vmatpush1.msra.mxu0 0.0
      %267 = vmatprep.subr.mxu0 0.0
      %268 = vmatpush1.msra.mxu0 0.0
      %269 = vmatprep.subr.mxu0 0.0
      %270 = vmatpush1.msra.mxu0 0.0
      %271 = vmatprep.subr.mxu0 0.0
      %272 = vmatpush1.msra.mxu0 0.0
      %273 = vmatprep.subr.mxu0 0.0
      %274 = vmatpush1.msra.mxu0 0.0
      %275 = vmatprep.subr.mxu0 0.0
      %276 = vmatpush1.msra.mxu0 0.0
      %277 = vmatprep.subr.mxu0 0.0
      %278 = vmatpush1.msra.mxu0 0.0
      %279 = vmatprep.subr.mxu0 0.0
      %280 = vmatpush1.msra.mxu0 0.0
      %281 = vmatprep.subr.mxu0 0.0
      %282 = vmatpush1.msra.mxu0 0.0
      %283 = vmatprep.subr.mxu0 0.0
      %284 = vmatpush1.msra.mxu0 0.0
      %285 = vmatprep.subr.mxu0 0.0
      %286 = vmatpush1.msra.mxu0 0.0
      %287 = vmatprep.subr.mxu0 0.0
      %288 = vmatpush1.msra.mxu0 0.0
      %289 = vmatprep.mubr.f32.mxu0 0.0
      %290 = vmatmul.mubr.f32.gmra.mrb[0].mxu0 %v202
      %v291 = vpop.f32.mrb[0].mxu0
      %v292 = vadd.f32 0.0, %v291
      %v293 = vpop.f32.mrb[0].mxu0
      %294 = vmatprep.mubr.f32.mxu0 0.0
      %295 = vmatmul.mubr.f32.gmra.mrb[0].mxu0 %v205
      %v296 = vpop.f32.mrb[0].mxu0
      %v297 = vadd.f32 0.0, %v296
      %v298 = vpop.f32.mrb[0].mxu0
      %299 = vmatprep.mubr.f32.mxu0 0.0
      %300 = vmatmul.mubr.f32.gmra.mrb[0].mxu0 %v208
      %v301 = vpop.f32.mrb[0].mxu0
      %v302 = vadd.f32 0.0, %v301
      %v303 = vpop.f32.mrb[0].mxu0
      %304 = vmatprep.mubr.f32.mxu0 0.0
      %305 = vmatmul.mubr.f32.gmra.mrb[0].mxu0 %v211
      %v306 = vpop.f32.mrb[0].mxu0
      %v307 = vadd.f32 0.0, %v306
      %v308 = vpop.f32.mrb[0].mxu0
      %309 = vmatprep.mubr.f32.mxu0 0.0
      %310 = vmatmul.mubr.f32.gmra.mrb[0].mxu0 %v214
      %v311 = vpop.f32.mrb[0].mxu0
      %v312 = vadd.f32 0.0, %v311
      %v313 = vpop.f32.mrb[0].mxu0
      %314 = vmatprep.mubr.f32.mxu0 0.0
      %315 = vmatmul.mubr.f32.gmra.mrb[0].mxu0 %v217
      %v316 = vpop.f32.mrb[0].mxu0
      %v317 = vadd.f32 0.0, %v316
      %v318 = vpop.f32.mrb[0].mxu0
      %319 = vmatprep.mubr.f32.mxu0 0.0
      %320 = vmatmul.mubr.f32.gmra.mrb[0].mxu0 %v220
      %v321 = vpop.f32.mrb[0].mxu0
      %v322 = vadd.f32 0.0, %v321
      %v323 = vpop.f32.mrb[0].mxu0
      %324 = vmatprep.mubr.f32.mxu0 0.0
      %325 = vmatmul.mubr.f32.gmra.mrb[0].mxu0 %v223
      %v326 = vpop.f32.mrb[0].mxu0
      %v327 = vadd.f32 0.0, %v326
      %v328 = vpop.f32.mrb[0].mxu0
      %329 = vdwg.mxu0
      %v331 = vsel %vm200, %v181, 0
      %v334 = vsel %vm200, %v182, 0
      %v337 = vsel %vm200, %v183, 0
      %v340 = vsel %vm200, %v184, 0
      %v343 = vsel %vm200, %v185, 0
      %v346 = vsel %vm200, %v186, 0
      %v349 = vsel %vm200, %v187, 0
      %v352 = vsel %vm200, %v188, 0
      %354 = vmatprep.subr.mxu0 0.0
      %355 = vmatpush1.msra.mxu0 %v198
      %356 = vmatprep.subr.mxu0 0.0
      %357 = vmatpush1.msra.mxu0 0.0
      %358 = vmatprep.subr.mxu0 0.0
      %359 = vmatpush1.msra.mxu0 0.0
      %360 = vmatprep.subr.mxu0 0.0
      %361 = vmatpush1.msra.mxu0 0.0
      %362 = vmatprep.subr.mxu0 0.0
      %363 = vmatpush1.msra.mxu0 0.0
      %364 = vmatprep.subr.mxu0 0.0
      %365 = vmatpush1.msra.mxu0 0.0
      %366 = vmatprep.subr.mxu0 0.0
      %367 = vmatpush1.msra.mxu0 0.0
      %368 = vmatprep.subr.mxu0 0.0
      %369 = vmatpush1.msra.mxu0 0.0
      %370 = vmatprep.subr.mxu0 0.0
      %371 = vmatpush1.msra.mxu0 0.0
      %372 = vmatprep.subr.mxu0 0.0
      %373 = vmatpush1.msra.mxu0 0.0
      %374 = vmatprep.subr.mxu0 0.0
      %375 = vmatpush1.msra.mxu0 0.0
      %376 = vmatprep.subr.mxu0 0.0
      %377 = vmatpush1.msra.mxu0 0.0
      %378 = vmatprep.subr.mxu0 0.0
      %379 = vmatpush1.msra.mxu0 0.0
      %380 = vmatprep.subr.mxu0 0.0
      %381 = vmatpush1.msra.mxu0 0.0
      %382 = vmatprep.subr.mxu0 0.0
      %383 = vmatpush1.msra.mxu0 0.0
      %384 = vmatprep.subr.mxu0 0.0
      %385 = vmatpush1.msra.mxu0 0.0
      %386 = vmatprep.subr.mxu0 0.0
      %387 = vmatpush1.msra.mxu0 0.0
      %388 = vmatprep.subr.mxu0 0.0
      %389 = vmatpush1.msra.mxu0 0.0
      %390 = vmatprep.subr.mxu0 0.0
      %391 = vmatpush1.msra.mxu0 0.0
      %392 = vmatprep.subr.mxu0 0.0
      %393 = vmatpush1.msra.mxu0 0.0
      %394 = vmatprep.subr.mxu0 0.0
      %395 = vmatpush1.msra.mxu0 0.0
      %396 = vmatprep.subr.mxu0 0.0
      %397 = vmatpush1.msra.mxu0 0.0
      %398 = vmatprep.subr.mxu0 0.0
      %399 = vmatpush1.msra.mxu0 0.0
      %400 = vmatprep.subr.mxu0 0.0
      %401 = vmatpush1.msra.mxu0 0.0
      %402 = vmatprep.subr.mxu0 0.0
      %403 = vmatpush1.msra.mxu0 0.0
      %404 = vmatprep.subr.mxu0 0.0
      %405 = vmatpush1.msra.mxu0 0.0
      %406 = vmatprep.subr.mxu0 0.0
      %407 = vmatpush1.msra.mxu0 0.0
      %408 = vmatprep.subr.mxu0 0.0
      %409 = vmatpush1.msra.mxu0 0.0
      %410 = vmatprep.subr.mxu0 0.0
      %411 = vmatpush1.msra.mxu0 0.0
      %412 = vmatprep.subr.mxu0 0.0
      %413 = vmatpush1.msra.mxu0 0.0
      %414 = vmatprep.subr.mxu0 0.0
      %415 = vmatpush1.msra.mxu0 0.0
      %416 = vmatprep.subr.mxu0 0.0
      %417 = vmatpush1.msra.mxu0 0.0
      %418 = vmatprep.mubr.f32.mxu0 0.0
      %419 = vmatmul.mubr.f32.gmra.mrb[0].mxu0 %v331
      %v420 = vpop.f32.mrb[0].mxu0
      %v421 = vadd.f32 %v292, %v420
      %v422 = vpop.f32.mrb[0].mxu0
      %423 = vmatprep.mubr.f32.mxu0 0.0
      %424 = vmatmul.mubr.f32.gmra.mrb[0].mxu0 %v334
      %v425 = vpop.f32.mrb[0].mxu0
      %v426 = vadd.f32 %v297, %v425
      %v427 = vpop.f32.mrb[0].mxu0
      %428 = vmatprep.mubr.f32.mxu0 0.0
      %429 = vmatmul.mubr.f32.gmra.mrb[0].mxu0 %v337
      %v430 = vpop.f32.mrb[0].mxu0
      %v431 = vadd.f32 %v302, %v430
      %v432 = vpop.f32.mrb[0].mxu0
      %433 = vmatprep.mubr.f32.mxu0 0.0
      %434 = vmatmul.mubr.f32.gmra.mrb[0].mxu0 %v340
      %v435 = vpop.f32.mrb[0].mxu0
      %v436 = vadd.f32 %v307, %v435
      %v437 = vpop.f32.mrb[0].mxu0
      %438 = vmatprep.mubr.f32.mxu0 0.0
      %439 = vmatmul.mubr.f32.gmra.mrb[0].mxu0 %v343
      %v440 = vpop.f32.mrb[0].mxu0
      %v441 = vadd.f32 %v312, %v440
      %v442 = vpop.f32.mrb[0].mxu0
      %443 = vmatprep.mubr.f32.mxu0 0.0
      %444 = vmatmul.mubr.f32.gmra.mrb[0].mxu0 %v346
      %v445 = vpop.f32.mrb[0].mxu0
      %v446 = vadd.f32 %v317, %v445
      %v447 = vpop.f32.mrb[0].mxu0
      %448 = vmatprep.mubr.f32.mxu0 0.0
      %449 = vmatmul.mubr.f32.gmra.mrb[0].mxu0 %v349
      %v450 = vpop.f32.mrb[0].mxu0
      %v451 = vadd.f32 %v322, %v450
      %v452 = vpop.f32.mrb[0].mxu0
      %453 = vmatprep.mubr.f32.mxu0 0.0
      %454 = vmatmul.mubr.f32.gmra.mrb[0].mxu0 %v352
      %v455 = vpop.f32.mrb[0].mxu0
      %v456 = vadd.f32 %v327, %v455
      %v457 = vpop.f32.mrb[0].mxu0
      %458 = vdwg.mxu0
      %459 = vxpose.xlu0.b32.start [1/16] %v421, 128
      %460 = vxpose.xlu0.b32.cont [2/16] %v426, 128
      %461 = vxpose.xlu0.b32.cont [3/16] %v431, 128
      %462 = vxpose.xlu0.b32.cont [4/16] %v436, 128
      %463 = vxpose.xlu0.b32.cont [5/16] %v441, 128
      %464 = vxpose.xlu0.b32.cont [6/16] %v446, 128
      %465 = vxpose.xlu0.b32.cont [7/16] %v451, 128
      %466 = vxpose.xlu0.b32.cont [8/16] %v456, 128
      %467 = vxpose.xlu0.b32.cont [9/16] 0.0, 128
      %468 = vxpose.xlu0.b32.cont [10/16] 0.0, 128
      %469 = vxpose.xlu0.b32.cont [11/16] 0.0, 128
      %470 = vxpose.xlu0.b32.cont [12/16] 0.0, 128
      %471 = vxpose.xlu0.b32.cont [13/16] 0.0, 128
      %472 = vxpose.xlu0.b32.cont [14/16] 0.0, 128
      %473 = vxpose.xlu0.b32.cont [15/16] 0.0, 128
      %474 = vxpose.xlu0.b32.end [16/16] 0.0, 128
      %v475 = vpop.trf.xlu0
      %v476 = vpop.trf.xlu0
      %v477 = vpop.trf.xlu0
      %v478 = vpop.trf.xlu0
      %v479 = vpop.trf.xlu0
      %v480 = vpop.trf.xlu0
      %v481 = vpop.trf.xlu0
      %v482 = vpop.trf.xlu0
      %v483 = vpop.trf.xlu0
      %v484 = vpop.trf.xlu0
      %v485 = vpop.trf.xlu0
      %v486 = vpop.trf.xlu0
      %v487 = vpop.trf.xlu0
      %v488 = vpop.trf.xlu0
      %v489 = vpop.trf.xlu0
      %v490 = vpop.trf.xlu0
      %vm491 = vcmask 519168
      %492 = vst.msk [vmem:[%s180] sm:$0xf] %vm491, %v475
      %p493 = scmp.lt.s32.totalorder %s17, 1
      %s494 = scalar_select %p493, %s17, 1
      %p495 = scmp.lt.s32.totalorder %s18, 0
      %s496 = scalar_select %p495, %s18, 0
      %s497 = sadd.s32 %s496, %s494
      %s498 = smul.addr %s497, 4
      %s499 = scalar_lea.vmem %s2, %s498
      // Predicated region
      $region29: #{downsample.1} parent=27 // pred_check
        %p500 = pneg %p94
      $region30: #{downsample.1} parent=27 // pred_check_branch
        %502 = sbr.rel (%p500) target = $region32
      $region31: #{downsample.1} parent=27 // pred_region
        _
      $region32: #{downsample.1} parent=27 // pred_fallthru
        _
    $region28: #{downsample.1} parent=5 // pred_fallthru
      _
    %p503 = scmp.le.s32.totalorder 2, %s8
    // Predicated region
    $region33: #{downsample.1} parent=5 // pred_check
      %p504 = pneg %p503
    $region34: #{downsample.1} parent=5 // pred_check_branch
      %506 = sbr.rel (%p504) target = $region36
    $region35: #{downsample.1} parent=5 // pred_region
      %s507 = ssub.s32 %s8, 2
      // Predicated region
      $region37: #{downsample.1} parent=35 // pred_check
        %p508 = pneg %p100
      $region38: #{downsample.1} parent=35 // pred_check_branch
        %510 = sbr.rel (%p508) target = $region40
      $region39: #{downsample.1} parent=35 // pred_region
        %p511 = scmp.lt.s32.totalorder %s19, 1
        %s512 = scalar_select %p511, %s19, 1
        %p513 = scmp.lt.s32.totalorder %s20, 0
        %s514 = scalar_select %p513, %s20, 0
        %s515 = sadd.s32 %s514, %s512
        %s516 = smul.addr %s515, 4
        %s517 = scalar_lea.vmem %s2, %s516
      $region40: #{downsample.1} parent=35 // pred_fallthru
        _
    $region36: #{downsample.1} parent=5 // pred_fallthru
      _
  $region6: #{downsample.1} parent=0 // loop_footer
    %s12 = sadd.s32 1, %s8
  $region7: #{downsample.1} parent=0 // loop_footer_branch
    %7 = sbr.rel target = $region3
  $region8: #{downsample.1} parent=0 // loop_exit
    _

</llo_original>
